<compile_context>
chip_gen: v6e
topology: v6e:2x2x1
jax: 0.10.0
libtpu: 0.0.40
codegen_flags: <defaults>
</compile_context>

<pallas_src>
import functools

import jax
import jax.numpy as jnp
from jax.experimental import pallas as pl
from jax.experimental.pallas import tpu as pltpu

_LANES = 128
# ~4 MiB per input per grid step: big enough that the ~0.35 us per-step
# pipeline overhead is <10% of HBM time on all gens, small enough that
# 2 inputs x 2 pipeline buffers (16 MiB) + small accumulator fit under the
# 32 MiB scoped-VMEM limit we request below.
_TARGET_BLOCK_BYTES = 4 * 1024 * 1024
_ACC_ROWS_PREF = (256, 128, 64, 32, 16, 8)


def _pick_acc_rows(block_rows):
    for cand in _ACC_ROWS_PREF:
        if block_rows % cand == 0:
            return cand
    return block_rows  # tiny inputs only; accumulator == block


def _num_tensorcores():
    """Best-effort TensorCore count (2 on v7x, 1 on v5e/v6e). Any value is correct."""
    try:
        info = pltpu.get_tpu_info()
        for name in ("num_cores", "num_tensorcores", "tensorcore_count",
                     "num_cores_per_chip", "cores_per_chip"):
            v = getattr(info, name, None)
            if isinstance(v, int) and 1 <= v <= 8:
                return v
    except Exception:
        pass
    try:
        v = getattr(jax.devices()[0], "num_cores", None)
        if isinstance(v, int) and 1 <= v <= 8:
            return v
    except Exception:
        pass
    # Fallback 2: a 2-way split is correct (and nearly free) on single-TC chips
    # and leaves no bandwidth on the table on dual-TC v7x.
    return 2


def _rmsle_kernel(pred_ref, actual_ref, out_ref, acc_ref, *,
                  rows, block_rows, acc_rows, steps_per_part, n_tiles,
                  ragged, overshoot):
    part = pl.program_id(0)   # "parallel": sharded across TCs on multi-core chips
    step = pl.program_id(1)   # "arbitrary": sequential reduction over row tiles
    tile = part * steps_per_part + step

    @pl.when(step == 0)
    def _():
        acc_ref[...] = jnp.zeros_like(acc_ref)

    def accumulate(masked):
        # Per-slab compute: elementwise temporaries stay at (acc_rows, 128)
        # instead of whole-block intermediates; accumulation is pure VPU.
        n_slabs = block_rows // acc_rows
        valid_rows = (rows - (n_tiles - 1) * block_rows) if masked else block_rows
        for s in range(n_slabs):
            lo = s * acc_rows
            if lo >= valid_rows:
                break  # trace-time: remaining slabs of the ragged tile are pure padding
            p = pred_ref[pl.ds(lo, acc_rows), :].astype(jnp.float32)
            a = actual_ref[pl.ds(lo, acc_rows), :].astype(jnp.float32)
            if lo + acc_rows > valid_rows:
                # Only the single straddling slab of the ragged last tile is masked.
                row = jax.lax.broadcasted_iota(jnp.int32, (acc_rows, _LANES), 0)
                keep = row < (valid_rows - lo)
                p = jnp.where(keep, p, 0.0)
                a = jnp.where(keep, a, 0.0)
            # torch semantics: log(x + 1); masked/padded zeros contribute log(1) = 0.
            d = jnp.log(p + 1.0) - jnp.log(a + 1.0)
            acc_ref[...] += d * d

    if ragged:
        @pl.when(tile == n_tiles - 1)
        def _():
            accumulate(masked=True)

        @pl.when(tile < n_tiles - 1)
        def _():
            accumulate(masked=False)
    elif overshoot:
        @pl.when(tile < n_tiles)
        def _():
            accumulate(masked=False)
    else:
        accumulate(masked=False)

    @pl.when(step == steps_per_part - 1)
    def _():
        # Single small cross-lane/sublane reduce per part.
        out_ref[0, 0] = jnp.sum(acc_ref[...])


def rmsle_loss(pred, actual):
    """sqrt(mean((log(pred+1) - log(actual+1))**2)) for any matching shapes/dtypes."""
    assert pred.shape == actual.shape
    n_elems = pred.size

    pred_f = pred.reshape(-1)
    actual_f = actual.reshape(-1)

    # Only the <128-element lane tail is ever padded; padded zeros contribute
    # log(0+1) - log(0+1) = 0 to the sum.
    rem = n_elems % _LANES
    if rem:
        pad = _LANES - rem
        pred_f = jnp.pad(pred_f, (0, pad))
        actual_f = jnp.pad(actual_f, (0, pad))

    rows = pred_f.size // _LANES
    pred2d = pred_f.reshape(rows, _LANES)
    actual2d = actual_f.reshape(rows, _LANES)

    # Block sized in bytes: bf16 inputs get 2x the rows of f32 at the same
    # HBM bytes per step; inputs are DMA'd in their storage dtype and upcast in VMEM.
    itemsize = jnp.dtype(pred.dtype).itemsize
    target_rows = max(8, _TARGET_BLOCK_BYTES // (_LANES * itemsize))
    block_rows = rows if rows <= target_rows else target_rows
    n_tiles = (rows + block_rows - 1) // block_rows
    ragged = (rows % block_rows) != 0

    # One part per TensorCore (v7x: 2 TCs sharing 3.2 TB/s aggregate HBM).
    n_parts = max(1, min(_num_tensorcores(), n_tiles))
    steps_per_part = (n_tiles + n_parts - 1) // n_parts
    overshoot = n_parts * steps_per_part > n_tiles

    acc_rows = _pick_acc_rows(block_rows)

    kernel = functools.partial(
        _rmsle_kernel,
        rows=rows, block_rows=block_rows, acc_rows=acc_rows,
        steps_per_part=steps_per_part, n_tiles=n_tiles,
        ragged=ragged, overshoot=overshoot,
    )

    # Out-of-range (overshoot) steps clamp onto the part's previous tile index,
    # so the pipeline sees an unchanged block index and elides the re-DMA; their
    # compute is skipped inside the kernel.
    def in_map(i, j):
        return (jnp.minimum(i * steps_per_part + j, n_tiles - 1), 0)

    partials = pl.pallas_call(
        kernel,
        out_shape=jax.ShapeDtypeStruct((n_parts, 1), jnp.float32),
        grid=(n_parts, steps_per_part),
        in_specs=[
            pl.BlockSpec((block_rows, _LANES), in_map),
            pl.BlockSpec((block_rows, _LANES), in_map),
        ],
        out_specs=pl.BlockSpec((1, 1), lambda i, j: (i, 0),
                               memory_space=pltpu.SMEM),
        scratch_shapes=[pltpu.VMEM((acc_rows, _LANES), jnp.float32)],
        compiler_params=pltpu.CompilerParams(
            dimension_semantics=("parallel", "arbitrary"),
            # 2 inputs x 2 pipeline buffers x 4 MiB + small acc ~= 16.2 MiB;
            # lift past v5e's 16 MiB scoped default (v6e/v7x default is 32 MiB).
            vmem_limit_bytes=32 * 1024 * 1024,
        ),
    )(pred2d, actual2d)

    # Combine per-part sums of squares; tiny XLA epilogue.
    return jnp.sqrt(jnp.sum(partials) / jnp.float32(n_elems))


def rmsle_loss_ref(pred, actual):
    p = pred.astype(jnp.float32)
    a = actual.astype(jnp.float32)
    d = jnp.log(p + 1.0) - jnp.log(a + 1.0)
    return jnp.sqrt(jnp.mean(d * d))


if __name__ == "__main__":
    key = jax.random.PRNGKey(0)
    k1, k2, k3, k4, k5, k6 = jax.random.split(key, 6)

    # 1) Small NCHW inputs (positive values, as expected for RMSLE).
    shape = (2, 4, 16, 16)
    pred = jax.random.uniform(k1, shape, dtype=jnp.float32, minval=0.0, maxval=5.0)
    actual = jax.random.uniform(k2, shape, dtype=jnp.float32, minval=0.0, maxval=5.0)
    loss = jax.block_until_ready(rmsle_loss(pred, actual))
    ref = jax.block_until_ready(rmsle_loss_ref(pred, actual))
    assert jnp.allclose(loss, ref, rtol=1e-5, atol=1e-6), (loss, ref)

    # 2) Larger input exercising multi-tile + 2-part split + ragged last tile +
    #    clamped overshoot step (rows = 20000 -> 3 tiles of 8192 rows).
    shape2 = (10, 16, 160, 100)
    pred2 = jax.random.uniform(k3, shape2, dtype=jnp.float32, minval=0.0, maxval=5.0)
    actual2 = jax.random.uniform(k4, shape2, dtype=jnp.float32, minval=0.0, maxval=5.0)
    loss2 = jax.block_until_ready(rmsle_loss(pred2, actual2))
    ref2 = jax.block_until_ready(rmsle_loss_ref(pred2, actual2))
    assert jnp.allclose(loss2, ref2, rtol=2e-5, atol=1e-6), (loss2, ref2)

    # 3) bf16 inputs (storage-dtype DMA + in-VMEM upcast path).
    shape3 = (4, 8, 80, 80)
    pred3 = jax.random.uniform(k5, shape3, dtype=jnp.float32,
                               minval=0.0, maxval=5.0).astype(jnp.bfloat16)
    actual3 = jax.random.uniform(k6, shape3, dtype=jnp.float32,
                                 minval=0.0, maxval=5.0).astype(jnp.bfloat16)
    loss3 = jax.block_until_ready(rmsle_loss(pred3, actual3))
    ref3 = jax.block_until_ready(rmsle_loss_ref(pred3, actual3))
    assert jnp.allclose(loss3, ref3, rtol=1e-4, atol=1e-6), (loss3, ref3)

    print("KERNEL_OK")
</pallas_src>

<mosaic_0001>
module attributes {stable_mosaic.version = 11 : i64} {
  func.func @_rmsle_kernel(%arg0: i32, %arg1: i32, %arg2: memref<16x128xf32, #tpu.memory_space<vmem>>, %arg3: memref<16x128xf32, #tpu.memory_space<vmem>>, %arg4: memref<1x1xf32, #tpu.memory_space<smem>>, %arg5: memref<16x128xf32, #tpu.memory_space<vmem>>) attributes {dimension_semantics = [#tpu.dimension_semantics<parallel>, #tpu.dimension_semantics<arbitrary>], iteration_bounds = array<i64: 1, 1>, scalar_prefetch = 0 : i64, scratch_operands = 1 : i64, tpu.core_type = #tpu.core_type<tc>, window_params = [{transform_indices = @transform_0, window_bounds = array<i64: 16, 128>}, {transform_indices = @transform_1, window_bounds = array<i64: 16, 128>}, {transform_indices = @transform_2, window_bounds = array<i64: 1, 1>}]} {
    %c0_i32 = arith.constant 0 : i32
    %0 = arith.cmpi eq, %arg1, %c0_i32 : i32
    %1 = arith.extui %0 : i1 to i32
    %c0_i32_0 = arith.constant 0 : i32
    %2 = arith.cmpi ne, %1, %c0_i32_0 : i32
    scf.if %2 {
      %cst_11 = arith.constant 0.000000e+00 : f32
      %19 = vector.broadcast %cst_11 : f32 to vector<16x128xf32>
      %c0_12 = arith.constant 0 : index
      %c0_13 = arith.constant 0 : index
      %20 = vector.load %arg5[%c0_12, %c0_13] : memref<16x128xf32, #tpu.memory_space<vmem>>, vector<16x128xf32>
      tpu.vector_store %arg5[%c0_12, %c0_13], %19 {strides = array<i32>} : memref<16x128xf32, #tpu.memory_space<vmem>>, vector<16x128xf32>,
    } else {
    }
    %c0 = arith.constant 0 : index
    %c0_1 = arith.constant 0 : index
    %3 = vector.load %arg2[%c0, %c0_1] : memref<16x128xf32, #tpu.memory_space<vmem>>, vector<16x128xf32>
    %c0_2 = arith.constant 0 : index
    %c0_3 = arith.constant 0 : index
    %4 = vector.load %arg3[%c0_2, %c0_3] : memref<16x128xf32, #tpu.memory_space<vmem>>, vector<16x128xf32>
    %cst = arith.constant 1.000000e+00 : f32
    %5 = vector.broadcast %cst : f32 to vector<16x128xf32>
    %6 = arith.addf %3, %5 : vector<16x128xf32>
    %7 = math.log %6 : vector<16x128xf32>
    %cst_4 = arith.constant 1.000000e+00 : f32
    %8 = vector.broadcast %cst_4 : f32 to vector<16x128xf32>
    %9 = arith.addf %4, %8 : vector<16x128xf32>
    %10 = math.log %9 : vector<16x128xf32>
    %11 = arith.subf %7, %10 : vector<16x128xf32>
    %c0_5 = arith.constant 0 : index
    %c0_6 = arith.constant 0 : index
    %12 = vector.load %arg5[%c0_5, %c0_6] : memref<16x128xf32, #tpu.memory_space<vmem>>, vector<16x128xf32>
    %13 = arith.mulf %11, %11 : vector<16x128xf32>
    %14 = arith.addf %12, %13 : vector<16x128xf32>
    %c0_7 = arith.constant 0 : index
    %c0_8 = arith.constant 0 : index
    %15 = vector.load %arg5[%c0_7, %c0_8] : memref<16x128xf32, #tpu.memory_space<vmem>>, vector<16x128xf32>
    tpu.vector_store %arg5[%c0_7, %c0_8], %14 {strides = array<i32>} : memref<16x128xf32, #tpu.memory_space<vmem>>, vector<16x128xf32>,
    %c0_i32_9 = arith.constant 0 : i32
    %16 = arith.cmpi eq, %arg1, %c0_i32_9 : i32
    %17 = arith.extui %16 : i1 to i32
    %c0_i32_10 = arith.constant 0 : i32
    %18 = arith.cmpi ne, %17, %c0_i32_10 : i32
    scf.if %18 {
      %c0_11 = arith.constant 0 : index
      %c0_12 = arith.constant 0 : index
      %19 = vector.load %arg5[%c0_11, %c0_12] : memref<16x128xf32, #tpu.memory_space<vmem>>, vector<16x128xf32>
      %20 = vector.shape_cast %19 : vector<16x128xf32> to vector<1x16x128xf32>
      %cst_13 = arith.constant dense<0.000000e+00> : vector<1xf32>
      %21 = vector.multi_reduction <add>, %20, %cst_13 [1, 2] : vector<1x16x128xf32> to vector<1xf32>
      %22 = vector.shape_cast %21 : vector<1xf32> to vector<1x1x1xf32>
      %23 = vector.extract %22[0, 0, 0] : f32 from vector<1x1x1xf32>
      %c0_14 = arith.constant 0 : index
      %c0_15 = arith.constant 0 : index
      %24 = memref.load %arg4[%c0_14, %c0_15] : memref<1x1xf32, #tpu.memory_space<smem>>
      memref.store %23, %arg4[%c0_14, %c0_15] : memref<1x1xf32, #tpu.memory_space<smem>>
    } else {
    }
    return
  }
  func.func @transform_0(%arg0: i32, %arg1: i32) -> (i32, i32) {
    %c1_i32 = arith.constant 1 : i32
    %0 = arith.muli %arg0, %c1_i32 : i32
    %1 = arith.addi %0, %arg1 : i32
    %c0_i32 = arith.constant 0 : i32
    %2 = arith.minsi %1, %c0_i32 : i32
    %c0_i32_0 = arith.constant 0 : i32
    %c0_i32_1 = arith.constant 0 : i32
    return %2, %c0_i32_0 : i32, i32
  }
  func.func @transform_1(%arg0: i32, %arg1: i32) -> (i32, i32) {
    %c1_i32 = arith.constant 1 : i32
    %0 = arith.muli %arg0, %c1_i32 : i32
    %1 = arith.addi %0, %arg1 : i32
    %c0_i32 = arith.constant 0 : i32
    %2 = arith.minsi %1, %c0_i32 : i32
    %c0_i32_0 = arith.constant 0 : i32
    %c0_i32_1 = arith.constant 0 : i32
    return %2, %c0_i32_0 : i32, i32
  }
  func.func @transform_2(%arg0: i32, %arg1: i32) -> (i32, i32) {
    %c0_i32 = arith.constant 0 : i32
    %c0_i32_0 = arith.constant 0 : i32
    return %arg0, %c0_i32 : i32, i32
  }
}

</mosaic_0001>

<llo_original>
// kernel: tpu_custom_call.1
$region0: #{tpu_custom_call.1}
  #allocation0 [shape = 'u32[]', space=smem, size = 0x4, offset = 0x4, fixed_abs, tag = 'smem constant byte address 0x4 - core index']
  #allocation1 [shape = 'u32[144,128]{1,0:T(1,128)}', space=vmem, size = 0x12000, scoped, tag = 'internal scratch']
  #allocation2 [shape = 'f32[16,128]{1,0:T(8,128)}', space=vmem, size = 0x2000, scoped, tag = 'scratch operand']
  %s0 = inlined_call_operand.hbm [shape: f32[16,128], index: 0, kind: input, shape index: {}]
  %s1 = inlined_call_operand.hbm [shape: f32[16,128], index: 1, kind: input, shape index: {}]
  %s2 = inlined_call_operand.hbm [shape: f32[1,1], index: 2, kind: output, shape index: {}]
  %s3 = sld [smem:[#allocation0]]
  $region34: #{tpu_custom_call.1} parent=0
    _
  %s5 = ssub.s32 1, %s3
  %s6 = scalar_select 0, %s5, %s3
  $region1: #{tpu_custom_call.1} parent=0
    #allocation3 [shape = 'u8[8192]{0}', space=vmem, size = 0x2000, scoped, tag = 'input window, operand 0, single buffered']
    #allocation4 [shape = 's32[1]{0}', space=sflag, size = 0x4, scoped, tag = 'scoped memory for tpu_custom_call.1']
    #allocation5 [shape = 's32[1]{0}', space=sflag, size = 0x4, scoped, tag = 'scoped memory for tpu_custom_call.1']
    #allocation6 [shape = 'u8[8192]{0}', space=vmem, size = 0x2000, scoped, tag = 'input window, operand 1, single buffered']
    #allocation7 [shape = 's32[1]{0}', space=sflag, size = 0x4, scoped, tag = 'scoped memory for tpu_custom_call.1']
    #allocation8 [shape = 'u8[512]{0}', space=smem, size = 0x200, scoped, tag = 'output window, operand 0, single buffered']
    %7 = vsyncpa [#allocation4], 0
    %8 = vsyncpa [#allocation7], 0
    %9 = vsyncpa [#allocation5], 0
    // Predicated region
    $region2: #{tpu_custom_call.1} parent=1 // pred_check
      _
    $region3: #{tpu_custom_call.1} parent=1 // pred_check_branch
      %11 = sbr.rel (0) target = $region5
    $region4: #{tpu_custom_call.1} parent=1 // pred_region
      %s12 = sadd.s32 0, 0
      %p13 = scmp.lt.s32.totalorder %s12, 0
      %s14 = scalar_select %p13, %s12, 0
      %s15 = smul.u32 2, %s14
      %s17 = ssub.s32 256, 256
      %18 = vsyncadd [#allocation4], %s17
      %s19 = smul.addr %s15, 128
      %s20 = scalar_lea.hbm %s0, %s19
      %s21 = sshll.u32 [#allocation3], 4
      %s22 = int_to_ptr.vmem [resolvable:$true] %s21
      %27 = dma.hbm_to_vmem [thread:$0]  %s20, 256, %s22, [#allocation4], 128, 128, 8
    $region5: #{tpu_custom_call.1} parent=1 // pred_fallthru
      _
    // Predicated region
    $region6: #{tpu_custom_call.1} parent=1 // pred_check
      _
    $region7: #{tpu_custom_call.1} parent=1 // pred_check_branch
      %29 = sbr.rel (0) target = $region9
    $region8: #{tpu_custom_call.1} parent=1 // pred_region
      %s30 = sadd.s32 0, 0
      %p31 = scmp.lt.s32.totalorder %s30, 0
      %s32 = scalar_select %p31, %s30, 0
      %s33 = smul.u32 2, %s32
      %s35 = ssub.s32 256, 256
      %36 = vsyncadd [#allocation7], %s35
      %s37 = smul.addr %s33, 128
      %s38 = scalar_lea.hbm %s1, %s37
      %s39 = sshll.u32 [#allocation6], 4
      %s40 = int_to_ptr.vmem [resolvable:$true] %s39
      %45 = dma.hbm_to_vmem [thread:$0]  %s38, 256, %s40, [#allocation7], 128, 128, 8
    $region9: #{tpu_custom_call.1} parent=1 // pred_fallthru
      _
    // Predicated region
    $region10: #{tpu_custom_call.1} parent=1 // pred_check
      _
    $region11: #{tpu_custom_call.1} parent=1 // pred_check_branch
      %47 = sbr.rel (0) target = $region13
    $region12: #{tpu_custom_call.1} parent=1 // pred_region
      %48 = dma.done [#allocation4], 256
    $region13: #{tpu_custom_call.1} parent=1 // pred_fallthru
      _
    // Predicated region
    $region14: #{tpu_custom_call.1} parent=1 // pred_check
      _
    $region15: #{tpu_custom_call.1} parent=1 // pred_check_branch
      %50 = sbr.rel (0) target = $region17
    $region16: #{tpu_custom_call.1} parent=1 // pred_region
      %51 = dma.done [#allocation7], 256
    $region17: #{tpu_custom_call.1} parent=1 // pred_fallthru
      _
    %s52 = sadd.s32 0, 0
    %p53 = scmp.lt.s32.totalorder %s52, 0
    %s54 = scalar_select %p53, %s52, 0
    %s55 = smul.u32 2, %s54
    %s56 = sadd.s32 0, 0
    %p57 = scmp.lt.s32.totalorder %s56, 0
    %s58 = scalar_select %p57, %s56, 0
    %s59 = smul.u32 2, %s58
    %p60 = scmp.eq.s32.totalorder 0, 0
    // Predicated region
    $region18: #{tpu_custom_call.1} parent=1 // pred_check
      %p61 = pneg %p60
    $region19: #{tpu_custom_call.1} parent=1 // pred_check_branch
      %63 = sbr.rel (%p61) target = $region21
    $region20: #{tpu_custom_call.1} parent=1 // pred_region
      %64 = vst [vmem:[#allocation2] sm:$0xff] 0.0
      %65 = vst [vmem:[#allocation2 + $0x8] sm:$0xff] 0.0
    $region21: #{tpu_custom_call.1} parent=1 // pred_fallthru
      _
    %v66 = vld [vmem:[#allocation3] sm:$0xff]
    %v67 = vld [vmem:[#allocation3 + $0x8] sm:$0xff]
    %v68 = vld [vmem:[#allocation6] sm:$0xff]
    %v69 = vld [vmem:[#allocation6 + $0x8] sm:$0xff]
    %v70 = vadd.f32 %v66, 1.0
    %v71 = vadd.f32 %v67, 1.0
    %v72 = vlog2.pop %v70
    %v73 = vmul.f32 %v72, 0.6931472
    %v74 = vlog2.pop %v71
    %v75 = vmul.f32 %v74, 0.6931472
    %v76 = vadd.f32 %v68, 1.0
    %v77 = vadd.f32 %v69, 1.0
    %v78 = vlog2.pop %v76
    %v79 = vmul.f32 %v78, 0.6931472
    %v80 = vlog2.pop %v77
    %v81 = vmul.f32 %v80, 0.6931472
    %v82 = vsub.f32 %v73, %v79
    %v83 = vsub.f32 %v75, %v81
    %v84 = vld [vmem:[#allocation2] sm:$0xff]
    %v85 = vld [vmem:[#allocation2 + $0x8] sm:$0xff]
    %v86 = vmul.f32 %v82, %v82
    %v87 = vmul.f32 %v83, %v83
    %v88 = vadd.f32 %v84, %v86
    %v89 = vadd.f32 %v85, %v87
    %90 = vst [vmem:[#allocation2] sm:$0xff] %v88
    %91 = vst [vmem:[#allocation2 + $0x8] sm:$0xff] %v89
    // Predicated region
    $region22: #{tpu_custom_call.1} parent=1 // pred_check
      %p92 = pneg %p60
    $region23: #{tpu_custom_call.1} parent=1 // pred_check_branch
      %94 = sbr.rel (%p92) target = $region25
    $region24: #{tpu_custom_call.1} parent=1 // pred_region
      %v95 = vld [vmem:[#allocation2] sm:$0xff]
      %v96 = vld [vmem:[#allocation2 + $0x8] sm:$0xff]
      %v97 = vadd.f32 %v95, %v96
      %98 = vadd.xlane.f32.xlu0 %v97
      %v99 = vpop.xlane.xlu0 %98
      %v100 = vrot.slane %v99, 4
      %v101 = vadd.f32 %v99, %v100
      %v102 = vrot.slane %v101, 2
      %v103 = vadd.f32 %v101, %v102
      %v104 = vrot.slane %v103, 1
      %v105 = vadd.f32 %v103, %v104
      %s106 = vtos %v105
      %s107 = scalar_lea.smem [#allocation8], 0
      %108 = sst [smem:[%s107]] %s106
    $region25: #{tpu_custom_call.1} parent=1 // pred_fallthru
      _
    // Predicated region
    $region26: #{tpu_custom_call.1} parent=1 // pred_check
      _
    $region27: #{tpu_custom_call.1} parent=1 // pred_check_branch
      %110 = sbr.rel (0) target = $region29
    $region28: #{tpu_custom_call.1} parent=1 // pred_region
      %s112 = ssub.s32 16, 16
      %113 = vsyncadd [#allocation5], %s112
      %116 = dma.smem_to_hbm [#allocation8], 16, %s2, [#allocation5]
    $region29: #{tpu_custom_call.1} parent=1 // pred_fallthru
      _
    // Predicated region
    $region30: #{tpu_custom_call.1} parent=1 // pred_check
      _
    $region31: #{tpu_custom_call.1} parent=1 // pred_check_branch
      %118 = sbr.rel (0) target = $region33
    $region32: #{tpu_custom_call.1} parent=1 // pred_region
      %119 = dma.done [#allocation5], 16
    $region33: #{tpu_custom_call.1} parent=1 // pred_fallthru
      _
    %120 = sfence
    %121 = vsyncpa [#allocation4], 1
    %122 = vsyncpa [#allocation7], 1
    %123 = vsyncpa [#allocation5], 1

</llo_original>
